<compile_context>
chip_gen: v6e
topology: v6e:2x2x1
jax: 0.10.0
libtpu: 0.0.40
codegen_flags: <defaults>
</compile_context>

<pallas_src>
import functools

import jax
import jax.numpy as jnp
from jax.experimental import pallas as pl
from jax.experimental.pallas import tpu as pltpu


# Logical hidden sizes from the PyTorch module.
L1, L2, L3, L4 = 100, 150, 200, 100
# Lane-padded hidden sizes (minimal multiples of 128 -> dense vregs / MXU tiles).
L1P, L2P, L3P, L4P = 128, 256, 256, 128

_NEG_BIG = -1e30  # bias for padded softmax lanes -> exp() underflows to 0


def _round_up(x, m):
    return ((x + m - 1) // m) * m


def _sigmoid(x):
    # One EUP tanh instead of exp + reciprocal.
    return 0.5 * (jnp.tanh(0.5 * x) + 1.0)


# ----------------------------- kernels ------------------------------------- #

def _mlp_trunk(x_ref, w_refs):
    """4x (linear, no bias, bf16 MXU operands, f32 accumulate) + sigmoid."""
    h = x_ref[...]
    for w_ref in w_refs:
        h = _sigmoid(jnp.dot(h.astype(jnp.bfloat16), w_ref[...],
                             preferred_element_type=jnp.float32))
    return h


def _actor_discrete_kernel(x_ref, w1_ref, w2_ref, w3_ref, w4_ref,
                           wo_ref, bo_ref, out_ref):
    """trunk -> linear(+bias) -> softmax(dim=-1). Padded lanes carry -1e30 bias."""
    h = _mlp_trunk(x_ref, (w1_ref, w2_ref, w3_ref, w4_ref))
    logits = jnp.dot(h.astype(jnp.bfloat16), wo_ref[...],
                     preferred_element_type=jnp.float32) + bo_ref[...]
    m = jnp.max(logits, axis=-1, keepdims=True)
    e = jnp.exp(logits - m)
    # Exact divide (one per row tile) so probabilities sum to exactly ~1.
    out_ref[...] = e / jnp.sum(e, axis=-1, keepdims=True)


def _actor_continuous_kernel(x_ref, w1_ref, w2_ref, w3_ref, w4_ref,
                             wh_ref, bh_ref, out_ref, *, action_dim):
    """trunk -> fused head: lane 0 = tanh(mu)*action_dim, lane 1 = softplus+1e-5."""
    h = _mlp_trunk(x_ref, (w1_ref, w2_ref, w3_ref, w4_ref))
    lin = jnp.dot(h.astype(jnp.bfloat16), wh_ref[...],
                  preferred_element_type=jnp.float32) + bh_ref[...]
    lane = jax.lax.broadcasted_iota(jnp.int32, lin.shape, dimension=1)
    mu = jnp.tanh(lin) * jnp.float32(action_dim)
    sigma = jax.nn.softplus(lin) + jnp.float32(1e-5)
    out_ref[...] = jnp.where(lane == 0, mu, sigma)


# ----------------------------- init helpers -------------------------------- #

def _xavier_uniform(key, in_f, out_f):
    # Stored transposed as (in_f, out_f) for the kernel's x @ W layout.
    bound = (6.0 / (in_f + out_f)) ** 0.5
    return jax.random.uniform(key, (in_f, out_f), jnp.float32, -bound, bound)


def _kaiming_uniform(key, in_f, out_f):
    # kaiming_uniform_ default (a=0): bound = sqrt(6 / fan_in)
    bound = (6.0 / in_f) ** 0.5
    return jax.random.uniform(key, (in_f, out_f), jnp.float32, -bound, bound)


def _linear_bias(key, in_f, out_f):
    # nn.Linear default bias init: uniform(+-1/sqrt(fan_in))
    bound = 1.0 / (in_f ** 0.5)
    return jax.random.uniform(key, (1, out_f), jnp.float32, -bound, bound)


def _pad_to(w, rows, cols, fill=0.0):
    out = jnp.full((rows, cols), jnp.float32(fill))
    return out.at[:w.shape[0], :w.shape[1]].set(w.astype(jnp.float32))


# ----------------------------- wrapper ------------------------------------- #

class ActorNetworkPallas:
    def __init__(self, state_dim, action_dim, continuous=False, seed=0):
        self.continuous = continuous
        self.action_dim = action_dim
        self.state_dim = state_dim

        keys = jax.random.split(jax.random.PRNGKey(seed), 8)
        # Logical (unpadded, already transposed to (in, out)) f32 weights for the ref.
        self.w1 = _xavier_uniform(keys[0], state_dim, L1)
        self.w2 = _xavier_uniform(keys[1], L1, L2)
        self.w3 = _xavier_uniform(keys[2], L2, L3)
        self.w4 = _xavier_uniform(keys[3], L3, L4)
        # Lane-padded bf16 copies for the MXU.  state_dim is NOT padded: the
        # full-array dim is exempt from the (8,128) block rule.
        self.w1p = _pad_to(self.w1, state_dim, L1P).astype(jnp.bfloat16)
        self.w2p = _pad_to(self.w2, L1P, L2P).astype(jnp.bfloat16)
        self.w3p = _pad_to(self.w3, L2P, L3P).astype(jnp.bfloat16)
        self.w4p = _pad_to(self.w4, L3P, L4P).astype(jnp.bfloat16)

        if not continuous:
            self._ap = _round_up(action_dim, 128)
            self.wo = _kaiming_uniform(keys[4], L4, action_dim)
            self.bo = _linear_bias(keys[5], L4, action_dim)
            self.wop = _pad_to(self.wo, L4P, self._ap).astype(jnp.bfloat16)
            # Padded logit lanes get a huge negative bias so softmax ignores them.
            self.bop = _pad_to(self.bo, 1, self._ap, fill=_NEG_BIG)
        else:
            self._ap = 128
            self.wmu = _kaiming_uniform(keys[4], L4, 1)
            self.bmu = _linear_bias(keys[5], L4, 1)
            self.wsg = _kaiming_uniform(keys[6], L4, 1)
            self.bsg = _linear_bias(keys[7], L4, 1)
            # Fused lane-padded head: lane 0 = mu projection, lane 1 = sigma.
            wh = jnp.zeros((L4P, 128), jnp.float32)
            wh = wh.at[:L4, 0:1].set(self.wmu).at[:L4, 1:2].set(self.wsg)
            bh = jnp.zeros((1, 128), jnp.float32)
            bh = bh.at[0, 0].set(self.bmu[0, 0]).at[0, 1].set(self.bsg[0, 0])
            self.whp = wh.astype(jnp.bfloat16)
            self.bhp = bh  # bias stays f32

        # jit caches the traced pallas_call per input shape -> no per-call
        # retracing/dispatch overhead (the real bottleneck at tiny RL batches).
        self._forward = jax.jit(
            self._forward_continuous if continuous else self._forward_discrete)

    # --- shared pallas_call plumbing ---------------------------------------- #

    def _call_kernel(self, kernel, x, operands, trans_per_row):
        batch, sd = x.shape
        ap = self._ap
        # >=2 grid steps whenever possible (v7x has 2 TensorCores) while the
        # per-step tile is capped at 1024 rows: amortizes the ~0.35us/step
        # overhead on v5e/v6e and keeps the per-core working set a few MiB.
        tm = min(1024, max(8, _round_up(pl.cdiv(batch, 2), 8)))
        grid = (pl.cdiv(batch, tm),)

        flops = 2 * batch * (sd * L1P + L1P * L2P + L2P * L3P + L3P * L4P + L4P * ap)
        w_bytes = sum(int(w.size) * w.dtype.itemsize for w in operands)
        bytes_accessed = 4 * batch * (sd + ap) + w_bytes

        # Weights / biases: constant index_map -> fetched once, VMEM-resident.
        weight_specs = [pl.BlockSpec(w.shape, lambda i: (0, 0)) for w in operands]

        return pl.pallas_call(
            kernel,
            out_shape=jax.ShapeDtypeStruct((batch, ap), jnp.float32),
            grid=grid,
            in_specs=[pl.BlockSpec((tm, sd), lambda i: (i, 0))] + weight_specs,
            out_specs=pl.BlockSpec((tm, ap), lambda i: (i, 0)),
            compiler_params=pltpu.CompilerParams(
                dimension_semantics=("parallel",),
                vmem_limit_bytes=32 * 1024 * 1024),
            cost_estimate=pl.CostEstimate(
                flops=flops,
                transcendentals=batch * trans_per_row,
                bytes_accessed=bytes_accessed),
        )(x, *operands)

    # --- discrete ------------------------------------------------------------ #

    def _forward_discrete(self, x):
        x = x.astype(jnp.float32)
        operands = (self.w1p, self.w2p, self.w3p, self.w4p, self.wop, self.bop)
        out = self._call_kernel(
            _actor_discrete_kernel, x, operands,
            trans_per_row=L1P + L2P + L3P + L4P + self._ap)
        return out[:, :self.action_dim]

    # --- continuous ---------------------------------------------------------- #

    def _forward_continuous(self, x):
        x = x.astype(jnp.float32)
        operands = (self.w1p, self.w2p, self.w3p, self.w4p, self.whp, self.bhp)
        kernel = functools.partial(_actor_continuous_kernel,
                                   action_dim=self.action_dim)
        out = self._call_kernel(
            kernel, x, operands,
            trans_per_row=L1P + L2P + L3P + L4P + 2 * 128)
        mu = out[:, 0:1]
        sigma = out[:, 1:2]
        return mu, sigma

    def __call__(self, x):
        return self._forward(x)


# ----------------------- pure-JAX reference (unpadded f32) ------------------ #

def _ref_discrete(net, x):
    h = x
    for w in (net.w1, net.w2, net.w3, net.w4):
        h = jax.nn.sigmoid(h @ w)
    return jax.nn.softmax(h @ net.wo + net.bo, axis=-1)


def _ref_continuous(net, x):
    h = x
    for w in (net.w1, net.w2, net.w3, net.w4):
        h = jax.nn.sigmoid(h @ w)
    mu = jnp.tanh(h @ net.wmu + net.bmu) * net.action_dim
    sigma = jax.nn.softplus(h @ net.wsg + net.bsg) + 1e-5
    return mu, sigma


if __name__ == "__main__":
    batch, state_dim, action_dim = 2, 8, 4
    x = jax.random.normal(jax.random.PRNGKey(0), (batch, state_dim), jnp.float32)

    # Discrete actor (default continuous=False).
    net_d = ActorNetworkPallas(state_dim, action_dim, continuous=False, seed=0)
    probs = jax.block_until_ready(net_d(x))
    ref_probs = _ref_discrete(net_d, x)
    assert probs.shape == (batch, action_dim)
    # bf16 MXU operands (f32 accumulate) -> ~1e-2-level tolerance vs f32 ref.
    assert jnp.allclose(probs, ref_probs, atol=2e-2, rtol=2e-2), (probs, ref_probs)
    # Exact softmax divide -> rows sum to 1.
    assert jnp.allclose(jnp.sum(probs, axis=-1), 1.0, atol=1e-3)

    # Continuous actor.
    net_c = ActorNetworkPallas(state_dim, action_dim, continuous=True, seed=1)
    mu, sigma = jax.block_until_ready(net_c(x))
    ref_mu, ref_sigma = _ref_continuous(net_c, x)
    assert mu.shape == (batch, 1) and sigma.shape == (batch, 1)
    assert jnp.allclose(mu, ref_mu, atol=5e-2, rtol=5e-2), (mu, ref_mu)
    assert jnp.allclose(sigma, ref_sigma, atol=2e-2, rtol=2e-2), (sigma, ref_sigma)

    # Ragged batch / multi-step grid path (grid=2 with a masked edge block).
    xb = jax.random.normal(jax.random.PRNGKey(1), (50, state_dim), jnp.float32)
    probs_b = jax.block_until_ready(net_d(xb))
    ref_b = _ref_discrete(net_d, xb)
    assert probs_b.shape == (50, action_dim)
    assert jnp.allclose(probs_b, ref_b, atol=2e-2, rtol=2e-2)
    assert jnp.allclose(jnp.sum(probs_b, axis=-1), 1.0, atol=1e-3)

    print("KERNEL_OK")
</pallas_src>

<mosaic_0001>
module attributes {stable_mosaic.version = 11 : i64} {
  func.func @_actor_discrete_kernel(%arg0: i32, %arg1: memref<8x8xf32, #tpu.memory_space<vmem>>, %arg2: memref<8x128xbf16, #tpu.memory_space<vmem>>, %arg3: memref<128x256xbf16, #tpu.memory_space<vmem>>, %arg4: memref<256x256xbf16, #tpu.memory_space<vmem>>, %arg5: memref<256x128xbf16, #tpu.memory_space<vmem>>, %arg6: memref<128x128xbf16, #tpu.memory_space<vmem>>, %arg7: memref<1x128xf32, #tpu.memory_space<vmem>>, %arg8: memref<8x128xf32, #tpu.memory_space<vmem>>) attributes {dimension_semantics = [#tpu.dimension_semantics<parallel>], iteration_bounds = array<i64: 1>, scalar_prefetch = 0 : i64, scratch_operands = 0 : i64, tpu.core_type = #tpu.core_type<tc>, window_params = [{transform_indices = @transform_0, window_bounds = array<i64: 8, 8>}, {pipeline_mode = #tpu.pipeline_mode<synchronous>, transform_indices = @transform_1, window_bounds = array<i64: 8, 128>}, {pipeline_mode = #tpu.pipeline_mode<synchronous>, transform_indices = @transform_2, window_bounds = array<i64: 128, 256>}, {pipeline_mode = #tpu.pipeline_mode<synchronous>, transform_indices = @transform_3, window_bounds = array<i64: 256, 256>}, {pipeline_mode = #tpu.pipeline_mode<synchronous>, transform_indices = @transform_4, window_bounds = array<i64: 256, 128>}, {pipeline_mode = #tpu.pipeline_mode<synchronous>, transform_indices = @transform_5, window_bounds = array<i64: 128, 128>}, {pipeline_mode = #tpu.pipeline_mode<synchronous>, transform_indices = @transform_6, window_bounds = array<i64: 1, 128>}, {transform_indices = @transform_7, window_bounds = array<i64: 8, 128>}]} {
    %c0 = arith.constant 0 : index
    %c0_0 = arith.constant 0 : index
    %0 = vector.load %arg1[%c0, %c0_0] : memref<8x8xf32, #tpu.memory_space<vmem>>, vector<8x8xf32>
    %1 = arith.truncf %0 : vector<8x8xf32> to vector<8x8xbf16>
    %c0_1 = arith.constant 0 : index
    %c0_2 = arith.constant 0 : index
    %2 = vector.load %arg2[%c0_1, %c0_2] : memref<8x128xbf16, #tpu.memory_space<vmem>>, vector<8x128xbf16>
    %cst = arith.constant dense<0.000000e+00> : vector<8x128xf32>
    %3 = tpu.matmul %1, %2, %cst {dimension_numbers = #tpu.dot_dimension_numbers<[1], [0], [0], [1], [0, 0, 1, 1], [], []>} : vector<8x8xbf16>, vector<8x128xbf16>, vector<8x128xf32> -> vector<8x128xf32>
    %cst_3 = arith.constant 5.000000e-01 : f32
    %4 = vector.broadcast %cst_3 : f32 to vector<8x128xf32>
    %5 = arith.mulf %4, %3 : vector<8x128xf32>
    %6 = math.tanh %5 : vector<8x128xf32>
    %cst_4 = arith.constant 1.000000e+00 : f32
    %7 = vector.broadcast %cst_4 : f32 to vector<8x128xf32>
    %8 = arith.addf %6, %7 : vector<8x128xf32>
    %cst_5 = arith.constant 5.000000e-01 : f32
    %9 = vector.broadcast %cst_5 : f32 to vector<8x128xf32>
    %10 = arith.mulf %9, %8 : vector<8x128xf32>
    %11 = arith.truncf %10 : vector<8x128xf32> to vector<8x128xbf16>
    %c0_6 = arith.constant 0 : index
    %c0_7 = arith.constant 0 : index
    %12 = vector.load %arg3[%c0_6, %c0_7] : memref<128x256xbf16, #tpu.memory_space<vmem>>, vector<128x256xbf16>
    %cst_8 = arith.constant dense<0.000000e+00> : vector<8x256xf32>
    %13 = tpu.matmul %11, %12, %cst_8 {dimension_numbers = #tpu.dot_dimension_numbers<[1], [0], [0], [1], [0, 0, 1, 1], [], []>} : vector<8x128xbf16>, vector<128x256xbf16>, vector<8x256xf32> -> vector<8x256xf32>
    %cst_9 = arith.constant 5.000000e-01 : f32
    %14 = vector.broadcast %cst_9 : f32 to vector<8x256xf32>
    %15 = arith.mulf %14, %13 : vector<8x256xf32>
    %16 = math.tanh %15 : vector<8x256xf32>
    %cst_10 = arith.constant 1.000000e+00 : f32
    %17 = vector.broadcast %cst_10 : f32 to vector<8x256xf32>
    %18 = arith.addf %16, %17 : vector<8x256xf32>
    %cst_11 = arith.constant 5.000000e-01 : f32
    %19 = vector.broadcast %cst_11 : f32 to vector<8x256xf32>
    %20 = arith.mulf %19, %18 : vector<8x256xf32>
    %21 = arith.truncf %20 : vector<8x256xf32> to vector<8x256xbf16>
    %c0_12 = arith.constant 0 : index
    %c0_13 = arith.constant 0 : index
    %22 = vector.load %arg4[%c0_12, %c0_13] : memref<256x256xbf16, #tpu.memory_space<vmem>>, vector<256x256xbf16>
    %cst_14 = arith.constant dense<0.000000e+00> : vector<8x256xf32>
    %23 = tpu.matmul %21, %22, %cst_14 {dimension_numbers = #tpu.dot_dimension_numbers<[1], [0], [0], [1], [0, 0, 1, 1], [], []>} : vector<8x256xbf16>, vector<256x256xbf16>, vector<8x256xf32> -> vector<8x256xf32>
    %cst_15 = arith.constant 5.000000e-01 : f32
    %24 = vector.broadcast %cst_15 : f32 to vector<8x256xf32>
    %25 = arith.mulf %24, %23 : vector<8x256xf32>
    %26 = math.tanh %25 : vector<8x256xf32>
    %cst_16 = arith.constant 1.000000e+00 : f32
    %27 = vector.broadcast %cst_16 : f32 to vector<8x256xf32>
    %28 = arith.addf %26, %27 : vector<8x256xf32>
    %cst_17 = arith.constant 5.000000e-01 : f32
    %29 = vector.broadcast %cst_17 : f32 to vector<8x256xf32>
    %30 = arith.mulf %29, %28 : vector<8x256xf32>
    %31 = arith.truncf %30 : vector<8x256xf32> to vector<8x256xbf16>
    %c0_18 = arith.constant 0 : index
    %c0_19 = arith.constant 0 : index
    %32 = vector.load %arg5[%c0_18, %c0_19] : memref<256x128xbf16, #tpu.memory_space<vmem>>, vector<256x128xbf16>
    %cst_20 = arith.constant dense<0.000000e+00> : vector<8x128xf32>
    %33 = tpu.matmul %31, %32, %cst_20 {dimension_numbers = #tpu.dot_dimension_numbers<[1], [0], [0], [1], [0, 0, 1, 1], [], []>} : vector<8x256xbf16>, vector<256x128xbf16>, vector<8x128xf32> -> vector<8x128xf32>
    %cst_21 = arith.constant 5.000000e-01 : f32
    %34 = vector.broadcast %cst_21 : f32 to vector<8x128xf32>
    %35 = arith.mulf %34, %33 : vector<8x128xf32>
    %36 = math.tanh %35 : vector<8x128xf32>
    %cst_22 = arith.constant 1.000000e+00 : f32
    %37 = vector.broadcast %cst_22 : f32 to vector<8x128xf32>
    %38 = arith.addf %36, %37 : vector<8x128xf32>
    %cst_23 = arith.constant 5.000000e-01 : f32
    %39 = vector.broadcast %cst_23 : f32 to vector<8x128xf32>
    %40 = arith.mulf %39, %38 : vector<8x128xf32>
    %41 = arith.truncf %40 : vector<8x128xf32> to vector<8x128xbf16>
    %c0_24 = arith.constant 0 : index
    %c0_25 = arith.constant 0 : index
    %42 = vector.load %arg6[%c0_24, %c0_25] : memref<128x128xbf16, #tpu.memory_space<vmem>>, vector<128x128xbf16>
    %cst_26 = arith.constant dense<0.000000e+00> : vector<8x128xf32>
    %43 = tpu.matmul %41, %42, %cst_26 {dimension_numbers = #tpu.dot_dimension_numbers<[1], [0], [0], [1], [0, 0, 1, 1], [], []>} : vector<8x128xbf16>, vector<128x128xbf16>, vector<8x128xf32> -> vector<8x128xf32>
    %c0_27 = arith.constant 0 : index
    %c0_28 = arith.constant 0 : index
    %44 = vector.load %arg7[%c0_27, %c0_28] : memref<1x128xf32, #tpu.memory_space<vmem>>, vector<1x128xf32>
    %45 = vector.broadcast %44 : vector<1x128xf32> to vector<8x128xf32>
    %46 = arith.addf %43, %45 : vector<8x128xf32>
    %cst_29 = arith.constant dense<0xFF800000> : vector<8xf32>
    %47 = vector.multi_reduction <maximumf>, %46, %cst_29 [1] : vector<8x128xf32> to vector<8xf32>
    %48 = vector.shape_cast %47 : vector<8xf32> to vector<8x1xf32>
    %49 = vector.broadcast %48 : vector<8x1xf32> to vector<8x128xf32>
    %50 = arith.subf %46, %49 : vector<8x128xf32>
    %51 = math.exp %50 : vector<8x128xf32>
    %cst_30 = arith.constant dense<0.000000e+00> : vector<8xf32>
    %52 = vector.multi_reduction <add>, %51, %cst_30 [1] : vector<8x128xf32> to vector<8xf32>
    %53 = vector.shape_cast %52 : vector<8xf32> to vector<8x1xf32>
    %54 = vector.broadcast %53 : vector<8x1xf32> to vector<8x128xf32>
    %55 = arith.divf %51, %54 : vector<8x128xf32>
    %c0_31 = arith.constant 0 : index
    %c0_32 = arith.constant 0 : index
    %56 = vector.load %arg8[%c0_31, %c0_32] : memref<8x128xf32, #tpu.memory_space<vmem>>, vector<8x128xf32>
    tpu.vector_store %arg8[%c0_31, %c0_32], %55 {strides = array<i32>} : memref<8x128xf32, #tpu.memory_space<vmem>>, vector<8x128xf32>,
    return
  }
  func.func @transform_0(%arg0: i32) -> (i32, i32) {
    %c0_i32 = arith.constant 0 : i32
    %c0_i32_0 = arith.constant 0 : i32
    return %arg0, %c0_i32 : i32, i32
  }
  func.func @transform_1(%arg0: i32) -> (i32, i32) {
    %c0_i32 = arith.constant 0 : i32
    %c0_i32_0 = arith.constant 0 : i32
    %c0_i32_1 = arith.constant 0 : i32
    return %c0_i32, %c0_i32_0 : i32, i32
  }
  func.func @transform_2(%arg0: i32) -> (i32, i32) {
    %c0_i32 = arith.constant 0 : i32
    %c0_i32_0 = arith.constant 0 : i32
    %c0_i32_1 = arith.constant 0 : i32
    return %c0_i32, %c0_i32_0 : i32, i32
  }
  func.func @transform_3(%arg0: i32) -> (i32, i32) {
    %c0_i32 = arith.constant 0 : i32
    %c0_i32_0 = arith.constant 0 : i32
    %c0_i32_1 = arith.constant 0 : i32
    return %c0_i32, %c0_i32_0 : i32, i32
  }
  func.func @transform_4(%arg0: i32) -> (i32, i32) {
    %c0_i32 = arith.constant 0 : i32
    %c0_i32_0 = arith.constant 0 : i32
    %c0_i32_1 = arith.constant 0 : i32
    return %c0_i32, %c0_i32_0 : i32, i32
  }
  func.func @transform_5(%arg0: i32) -> (i32, i32) {
    %c0_i32 = arith.constant 0 : i32
    %c0_i32_0 = arith.constant 0 : i32
    %c0_i32_1 = arith.constant 0 : i32
    return %c0_i32, %c0_i32_0 : i32, i32
  }
  func.func @transform_6(%arg0: i32) -> (i32, i32) {
    %c0_i32 = arith.constant 0 : i32
    %c0_i32_0 = arith.constant 0 : i32
    %c0_i32_1 = arith.constant 0 : i32
    return %c0_i32, %c0_i32_0 : i32, i32
  }
  func.func @transform_7(%arg0: i32) -> (i32, i32) {
    %c0_i32 = arith.constant 0 : i32
    %c0_i32_0 = arith.constant 0 : i32
    return %arg0, %c0_i32 : i32, i32
  }
}

</mosaic_0001>

<llo_original>
// kernel: _forward_discrete.1
$region0: #{_forward_discrete.1}
  #allocation0 [shape = 'u32[]', space=smem, size = 0x4, offset = 0x4, fixed_abs, tag = 'smem constant byte address 0x4 - core index']
  #allocation1 [shape = 'u32[144,128]{1,0:T(1,128)}', space=vmem, size = 0x12000, scoped, tag = 'internal scratch']
  %s0 = inlined_call_operand.hbm [shape: f32[2,8], index: 0, kind: input, shape index: {}]
  %s1 = inlined_call_operand.hbm [shape: bf16[8,128], index: 1, kind: input, shape index: {}]
  %s2 = inlined_call_operand.hbm [shape: bf16[128,256], index: 2, kind: input, shape index: {}]
  %s3 = inlined_call_operand.hbm [shape: bf16[256,256], index: 3, kind: input, shape index: {}]
  %s4 = inlined_call_operand.hbm [shape: bf16[256,128], index: 4, kind: input, shape index: {}]
  %s5 = inlined_call_operand.hbm [shape: bf16[128,128], index: 5, kind: input, shape index: {}]
  %s6 = inlined_call_operand.vmem [shape: f32[1,128], index: 6, kind: input, shape index: {}]
  %s7 = inlined_call_operand.hbm [shape: f32[2,128], index: 7, kind: output, shape index: {}]
  %s8 = sld [smem:[#allocation0]]
  $region62: #{_forward_discrete.1} parent=0
    _
  %s10 = ssub.s32 1, %s8
  %s11 = scalar_select 0, %s10, %s8
  $region1: #{_forward_discrete.1} parent=0
    #allocation2 [shape = 'u8[4096]{0}', space=vmem, size = 0x1000, scoped, tag = 'input window, operand 0, single buffered']
    #allocation3 [shape = 's32[1]{0}', space=sflag, size = 0x4, scoped, tag = 'scoped memory for _forward_discrete.1']
    #allocation4 [shape = 's32[1]{0}', space=sflag, size = 0x4, scoped, tag = 'scoped memory for _forward_discrete.1']
    #allocation5 [shape = 'u8[2048]{0}', space=vmem, size = 0x800, scoped, tag = 'input window, operand 1, single buffered']
    #allocation6 [shape = 's32[1]{0}', space=sflag, size = 0x4, scoped, tag = 'scoped memory for _forward_discrete.1']
    #allocation7 [shape = 'u8[65536]{0}', space=vmem, size = 0x10000, scoped, tag = 'input window, operand 2, single buffered']
    #allocation8 [shape = 'u8[131072]{0}', space=vmem, size = 0x20000, scoped, tag = 'input window, operand 3, single buffered']
    #allocation9 [shape = 's32[1]{0}', space=sflag, size = 0x4, scoped, tag = 'scoped memory for _forward_discrete.1']
    #allocation10 [shape = 'u8[65536]{0}', space=vmem, size = 0x10000, scoped, tag = 'input window, operand 4, single buffered']
    #allocation11 [shape = 'u8[32768]{0}', space=vmem, size = 0x8000, scoped, tag = 'input window, operand 5, single buffered']
    #allocation12 [shape = 's32[1]{0}', space=sflag, size = 0x4, scoped, tag = 'scoped memory for _forward_discrete.1']
    #allocation13 [shape = 'u8[4096]{0}', space=vmem, size = 0x1000, scoped, tag = 'output window, operand 0, single buffered']
    %12 = vsyncpa [#allocation3], 0
    %13 = vsyncpa [#allocation6], 0
    %14 = vsyncpa [#allocation9], 0
    %15 = vsyncpa [#allocation12], 0
    %16 = vsyncpa [#allocation4], 0
    // Predicated region
    $region2: #{_forward_discrete.1} parent=1 // pred_check
      _
    $region3: #{_forward_discrete.1} parent=1 // pred_check_branch
      %18 = sbr.rel (0) target = $region5
    $region4: #{_forward_discrete.1} parent=1 // pred_region
      %s20 = ssub.s32 128, 32
      %21 = vsyncadd [#allocation3], %s20
      %s22 = sshll.u32 [#allocation2], 4
      %s23 = int_to_ptr.vmem [resolvable:$true] %s22
      %28 = dma.hbm_to_vmem [thread:$0]  %s0, 32, %s23, [#allocation3], 32, 32, 2
    $region5: #{_forward_discrete.1} parent=1 // pred_fallthru
      _
    // Predicated region
    $region6: #{_forward_discrete.1} parent=1 // pred_check
      _
    $region7: #{_forward_discrete.1} parent=1 // pred_check_branch
      %30 = sbr.rel (0) target = $region9
    $region8: #{_forward_discrete.1} parent=1 // pred_region
      %s32 = ssub.s32 64, 64
      %33 = vsyncadd [#allocation6], %s32
      %s35 = sshll.u32 [#allocation5], 4
      %s36 = int_to_ptr.vmem [resolvable:$true] %s35
      %38 = dma.hbm_to_vmem [thread:$0]  %s1, 64, %s36, [#allocation6]
    $region9: #{_forward_discrete.1} parent=1 // pred_fallthru
      _
    // Predicated region
    $region10: #{_forward_discrete.1} parent=1 // pred_check
      _
    $region11: #{_forward_discrete.1} parent=1 // pred_check_branch
      %40 = sbr.rel (0) target = $region13
    $region12: #{_forward_discrete.1} parent=1 // pred_region
      %s42 = ssub.s32 2048, 2048
      %43 = vsyncadd [#allocation6], %s42
      %s44 = sshll.u32 [#allocation7], 4
      %s45 = int_to_ptr.vmem [resolvable:$true] %s44
      %50 = dma.hbm_to_vmem [thread:$0]  %s2, 2048, %s45, [#allocation6], 128, 128, 8
    $region13: #{_forward_discrete.1} parent=1 // pred_fallthru
      _
    // Predicated region
    $region14: #{_forward_discrete.1} parent=1 // pred_check
      _
    $region15: #{_forward_discrete.1} parent=1 // pred_check_branch
      %52 = sbr.rel (0) target = $region17
    $region16: #{_forward_discrete.1} parent=1 // pred_region
      %s54 = ssub.s32 4096, 4096
      %55 = vsyncadd [#allocation9], %s54
      %s56 = sshll.u32 [#allocation8], 4
      %s57 = int_to_ptr.vmem [resolvable:$true] %s56
      %62 = dma.hbm_to_vmem [thread:$0]  %s3, 4096, %s57, [#allocation9], 128, 128, 8
    $region17: #{_forward_discrete.1} parent=1 // pred_fallthru
      _
    // Predicated region
    $region18: #{_forward_discrete.1} parent=1 // pred_check
      _
    $region19: #{_forward_discrete.1} parent=1 // pred_check_branch
      %64 = sbr.rel (0) target = $region21
    $region20: #{_forward_discrete.1} parent=1 // pred_region
      %s66 = ssub.s32 2048, 2048
      %67 = vsyncadd [#allocation9], %s66
      %s68 = sshll.u32 [#allocation10], 4
      %s69 = int_to_ptr.vmem [resolvable:$true] %s68
      %74 = dma.hbm_to_vmem [thread:$0]  %s4, 2048, %s69, [#allocation9], 64, 64, 4
    $region21: #{_forward_discrete.1} parent=1 // pred_fallthru
      _
    // Predicated region
    $region22: #{_forward_discrete.1} parent=1 // pred_check
      _
    $region23: #{_forward_discrete.1} parent=1 // pred_check_branch
      %76 = sbr.rel (0) target = $region25
    $region24: #{_forward_discrete.1} parent=1 // pred_region
      %s78 = ssub.s32 1024, 1024
      %79 = vsyncadd [#allocation12], %s78
      %s80 = sshll.u32 [#allocation11], 4
      %s81 = int_to_ptr.vmem [resolvable:$true] %s80
      %86 = dma.hbm_to_vmem [thread:$0]  %s5, 1024, %s81, [#allocation12], 64, 64, 4
    $region25: #{_forward_discrete.1} parent=1 // pred_fallthru
      _
    // Predicated region
    $region26: #{_forward_discrete.1} parent=1 // pred_check
      _
    $region27: #{_forward_discrete.1} parent=1 // pred_check_branch
      %88 = sbr.rel (0) target = $region29
    $region28: #{_forward_discrete.1} parent=1 // pred_region
      _
    $region29: #{_forward_discrete.1} parent=1 // pred_fallthru
      _
    // Predicated region
    $region30: #{_forward_discrete.1} parent=1 // pred_check
      _
    $region31: #{_forward_discrete.1} parent=1 // pred_check_branch
      %90 = sbr.rel (0) target = $region33
    $region32: #{_forward_discrete.1} parent=1 // pred_region
      %91 = dma.done [#allocation3], 128
    $region33: #{_forward_discrete.1} parent=1 // pred_fallthru
      _
    // Predicated region
    $region34: #{_forward_discrete.1} parent=1 // pred_check
      _
    $region35: #{_forward_discrete.1} parent=1 // pred_check_branch
      %93 = sbr.rel (0) target = $region37
    $region36: #{_forward_discrete.1} parent=1 // pred_region
      %94 = dma.done [#allocation6], 64
    $region37: #{_forward_discrete.1} parent=1 // pred_fallthru
      _
    // Predicated region
    $region38: #{_forward_discrete.1} parent=1 // pred_check
      _
    $region39: #{_forward_discrete.1} parent=1 // pred_check_branch
      %96 = sbr.rel (0) target = $region41
    $region40: #{_forward_discrete.1} parent=1 // pred_region
      %97 = dma.done [#allocation6], 2048
    $region41: #{_forward_discrete.1} parent=1 // pred_fallthru
      _
    // Predicated region
    $region42: #{_forward_discrete.1} parent=1 // pred_check
      _
    $region43: #{_forward_discrete.1} parent=1 // pred_check_branch
      %99 = sbr.rel (0) target = $region45
    $region44: #{_forward_discrete.1} parent=1 // pred_region
      %100 = dma.done [#allocation9], 4096
    $region45: #{_forward_discrete.1} parent=1 // pred_fallthru
      _
    // Predicated region
    $region46: #{_forward_discrete.1} parent=1 // pred_check
      _
    $region47: #{_forward_discrete.1} parent=1 // pred_check_branch
      %102 = sbr.rel (0) target = $region49
    $region48: #{_forward_discrete.1} parent=1 // pred_region
      %103 = dma.done [#allocation9], 2048
    $region49: #{_forward_discrete.1} parent=1 // pred_fallthru
      _
    // Predicated region
    $region50: #{_forward_discrete.1} parent=1 // pred_check
      _
    $region51: #{_forward_discrete.1} parent=1 // pred_check_branch
      %105 = sbr.rel (0) target = $region53
    $region52: #{_forward_discrete.1} parent=1 // pred_region
      %106 = dma.done [#allocation12], 1024
    $region53: #{_forward_discrete.1} parent=1 // pred_fallthru
      _
    %v108 = vld [vmem:[#allocation2] sm:$0xff]
    %v109 = vpack.c.bf16 %v108, %v108
    %v110 = vld [vmem:[#allocation5] sm:$0xf]
    %vm111 = vcmask 64512
    %v113 = vsel %vm111, %v109, 0
    %vm115 = vcmask 1043456
    %v117 = vsel %vm115, %v110, 0
    %119 = vmatprep.subr.bf16.mxu0 0
    %120 = vmatpush1.bf16.msra.mxu0 0
    %121 = vmatprep.subr.bf16.mxu0 0
    %122 = vmatpush1.bf16.msra.mxu0 0
    %123 = vmatprep.subr.bf16.mxu0 0
    %124 = vmatpush1.bf16.msra.mxu0 0
    %125 = vmatprep.subr.bf16.mxu0 0
    %126 = vmatpush1.bf16.msra.mxu0 0
    %127 = vmatprep.subr.bf16.mxu0 0
    %128 = vmatpush1.bf16.msra.mxu0 0
    %129 = vmatprep.subr.bf16.mxu0 0
    %130 = vmatpush1.bf16.msra.mxu0 0
    %131 = vmatprep.subr.bf16.mxu0 0
    %132 = vmatpush1.bf16.msra.mxu0 0
    %133 = vmatprep.subr.bf16.mxu0 0
    %134 = vmatpush1.bf16.msra.mxu0 %v117
    %135 = vmatprep.subr.bf16.mxu0 0
    %136 = vmatpush2.bf16.msra.mxu0 0
    %137 = vmatprep.subr.bf16.mxu0 0
    %138 = vmatpush2.bf16.msra.mxu0 0
    %139 = vmatprep.subr.bf16.mxu0 0
    %140 = vmatpush2.bf16.msra.mxu0 0
    %141 = vmatprep.subr.bf16.mxu0 0
    %142 = vmatpush2.bf16.msra.mxu0 0
    %143 = vmatprep.subr.bf16.mxu0 0
    %144 = vmatpush2.bf16.msra.mxu0 0
    %145 = vmatprep.subr.bf16.mxu0 0
    %146 = vmatpush2.bf16.msra.mxu0 0
    %147 = vmatprep.subr.bf16.mxu0 0
    %148 = vmatpush2.bf16.msra.mxu0 0
    %149 = vmatprep.subr.bf16.mxu0 0
    %150 = vmatpush2.bf16.msra.mxu0 0
    %151 = vmatprep.mubr.bf16.mxu0 0
    %152 = vmatmul.mubr.bf16.gmra.mxu0 %v113
    %v153 = vpop.f32.mrf.mxu0
    %v154 = vadd.f32 0.0, %v153
    %v155 = vpop.f32.mrf.mxu0
    %v156 = vpop.f32.mrf.mxu0
    %v157 = vpop.f32.mrf.mxu0
    %158 = vdwg.mxu0
    %v159 = vmul.f32 %v154, 0.5
    %v160 = vtanh.pop %v159
    %v161 = vadd.f32 %v160, 1.0
    %v162 = vmul.f32 %v161, 0.5
    %v163 = vpack.c.bf16 %v162, %v162
    %v164 = vld [vmem:[#allocation7] sm:$0xff]
    %v165 = vld [vmem:[#allocation7 + $0x8] sm:$0xff]
    %v166 = vld [vmem:[#allocation7 + $0x10] sm:$0xff]
    %v167 = vld [vmem:[#allocation7 + $0x18] sm:$0xff]
    %v168 = vld [vmem:[#allocation7 + $0x20] sm:$0xff]
    %v169 = vld [vmem:[#allocation7 + $0x28] sm:$0xff]
    %v170 = vld [vmem:[#allocation7 + $0x30] sm:$0xff]
    %v171 = vld [vmem:[#allocation7 + $0x38] sm:$0xff]
    %v172 = vld [vmem:[#allocation7 + $0x40] sm:$0xff]
    %v173 = vld [vmem:[#allocation7 + $0x48] sm:$0xff]
    %v174 = vld [vmem:[#allocation7 + $0x50] sm:$0xff]
    %v175 = vld [vmem:[#allocation7 + $0x58] sm:$0xff]
    %v176 = vld [vmem:[#allocation7 + $0x60] sm:$0xff]
    %v177 = vld [vmem:[#allocation7 + $0x68] sm:$0xff]
    %v178 = vld [vmem:[#allocation7 + $0x70] sm:$0xff]
    %v179 = vld [vmem:[#allocation7 + $0x78] sm:$0xff]
    %v196 = vunpack.c.l.b16 %v164
    %v197 = vunpack.c.h.b16 %v164
    %v198 = vunpack.c.l.b16 %v165
    %v199 = vunpack.c.h.b16 %v165
    %v200 = vunpack.c.l.b16 %v166
    %v201 = vunpack.c.h.b16 %v166
    %v202 = vunpack.c.l.b16 %v167
    %v203 = vunpack.c.h.b16 %v167
    %v204 = vunpack.c.l.b16 %v168
    %v205 = vunpack.c.h.b16 %v168
    %v206 = vunpack.c.l.b16 %v169
    %v207 = vunpack.c.h.b16 %v169
    %v208 = vunpack.c.l.b16 %v170
    %v209 = vunpack.c.h.b16 %v170
    %v210 = vunpack.c.l.b16 %v171
    %v211 = vunpack.c.h.b16 %v171
    %v212 = vunpack.c.l.b16 %v172
    %v213 = vunpack.c.h.b16 %v172
    %v214 = vunpack.c.l.b16 %v173
    %v215 = vunpack.c.h.b16 %v173
    %v216 = vunpack.c.l.b16 %v174
    %v217 = vunpack.c.h.b16 %v174
    %v218 = vunpack.c.l.b16 %v175
    %v219 = vunpack.c.h.b16 %v175
    %v220 = vunpack.c.l.b16 %v176
    %v221 = vunpack.c.h.b16 %v176
    %v222 = vunpack.c.l.b16 %v177
    %v223 = vunpack.c.h.b16 %v177
    %v224 = vunpack.c.l.b16 %v178
    %v225 = vunpack.c.h.b16 %v178
    %v226 = vunpack.c.l.b16 %v179
    %v227 = vunpack.c.h.b16 %v179
    %v228 = vpack.c.b16 %v198, %v196
    %v229 = vpack.c.b16 %v199, %v197
    %v230 = vpack.c.b16 %v202, %v200
    %v231 = vpack.c.b16 %v203, %v201
    %v232 = vpack.c.b16 %v206, %v204
    %v233 = vpack.c.b16 %v207, %v205
    %v234 = vpack.c.b16 %v210, %v208
    %v235 = vpack.c.b16 %v211, %v209
    %v236 = vpack.c.b16 %v214, %v212
    %v237 = vpack.c.b16 %v215, %v213
    %v238 = vpack.c.b16 %v218, %v216
    %v239 = vpack.c.b16 %v219, %v217
    %v240 = vpack.c.b16 %v222, %v220
    %v241 = vpack.c.b16 %v223, %v221
    %v242 = vpack.c.b16 %v226, %v224
    %v243 = vpack.c.b16 %v227, %v225
    %260 = vmatprep.subr.bf16.mxu0 %v243
    %261 = vmatpush1.bf16.msra.mxu0 %v242
    %262 = vmatprep.subr.bf16.mxu0 %v241
    %263 = vmatpush1.bf16.msra.mxu0 %v240
    %264 = vmatprep.subr.bf16.mxu0 %v239
    %265 = vmatpush1.bf16.msra.mxu0 %v238
    %266 = vmatprep.subr.bf16.mxu0 %v237
    %267 = vmatpush1.bf16.msra.mxu0 %v236
    %268 = vmatprep.subr.bf16.mxu0 %v235
    %269 = vmatpush1.bf16.msra.mxu0 %v234
    %270 = vmatprep.subr.bf16.mxu0 %v233
    %271 = vmatpush1.bf16.msra.mxu0 %v232
    %272 = vmatprep.subr.bf16.mxu0 %v231
    %273 = vmatpush1.bf16.msra.mxu0 %v230
    %274 = vmatprep.subr.bf16.mxu0 %v229
    %275 = vmatpush1.bf16.msra.mxu0 %v228
    %276 = vmatprep.subr.bf16.mxu0 0
    %277 = vmatpush2.bf16.msra.mxu0 0
    %278 = vmatprep.subr.bf16.mxu0 0
    %279 = vmatpush2.bf16.msra.mxu0 0
    %280 = vmatprep.subr.bf16.mxu0 0
    %281 = vmatpush2.bf16.msra.mxu0 0
    %282 = vmatprep.subr.bf16.mxu0 0
    %283 = vmatpush2.bf16.msra.mxu0 0
    %284 = vmatprep.subr.bf16.mxu0 0
    %285 = vmatpush2.bf16.msra.mxu0 0
    %286 = vmatprep.subr.bf16.mxu0 0
    %287 = vmatpush2.bf16.msra.mxu0 0
    %288 = vmatprep.subr.bf16.mxu0 0
    %289 = vmatpush2.bf16.msra.mxu0 0
    %290 = vmatprep.subr.bf16.mxu0 0
    %291 = vmatpush2.bf16.msra.mxu0 0
    %292 = vmatprep.mubr.bf16.mxu0 0
    %293 = vmatmul.mubr.bf16.gmra.mxu0 %v163
    %v294 = vpop.f32.mrf.mxu0
    %v295 = vadd.f32 0.0, %v294
    %v296 = vpop.f32.mrf.mxu0
    %v297 = vadd.f32 0.0, %v296
    %v298 = vpop.f32.mrf.mxu0
    %v299 = vpop.f32.mrf.mxu0
    %300 = vdwg.mxu0
    %v301 = vmul.f32 %v295, 0.5
    %v302 = vmul.f32 %v297, 0.5
    %v303 = vtanh.pop %v301
    %v304 = vtanh.pop %v302
    %v305 = vadd.f32 %v303, 1.0
    %v306 = vadd.f32 %v304, 1.0
    %v307 = vmul.f32 %v305, 0.5
    %v308 = vmul.f32 %v306, 0.5
    %v309 = vpack.c.bf16 %v307, %v307
    %v310 = vpack.c.bf16 %v308, %v308
    %v311 = vld [vmem:[#allocation8] sm:$0xff]
    %v312 = vld [vmem:[#allocation8 + $0x8] sm:$0xff]
    %v313 = vld [vmem:[#allocation8 + $0x10] sm:$0xff]
    %v314 = vld [vmem:[#allocation8 + $0x18] sm:$0xff]
    %v315 = vld [vmem:[#allocation8 + $0x20] sm:$0xff]
    %v316 = vld [vmem:[#allocation8 + $0x28] sm:$0xff]
    %v317 = vld [vmem:[#allocation8 + $0x30] sm:$0xff]
    %v318 = vld [vmem:[#allocation8 + $0x38] sm:$0xff]
    %v319 = vld [vmem:[#allocation8 + $0x40] sm:$0xff]
    %v320 = vld [vmem:[#allocation8 + $0x48] sm:$0xff]
    %v321 = vld [vmem:[#allocation8 + $0x50] sm:$0xff]
    %v322 = vld [vmem:[#allocation8 + $0x58] sm:$0xff]
    %v323 = vld [vmem:[#allocation8 + $0x60] sm:$0xff]
    %v324 = vld [vmem:[#allocation8 + $0x68] sm:$0xff]
    %v325 = vld [vmem:[#allocation8 + $0x70] sm:$0xff]
    %v326 = vld [vmem:[#allocation8 + $0x78] sm:$0xff]
    %v327 = vld [vmem:[#allocation8 + $0x80] sm:$0xff]
    %v328 = vld [vmem:[#allocation8 + $0x88] sm:$0xff]
    %v329 = vld [vmem:[#allocation8 + $0x90] sm:$0xff]
    %v330 = vld [vmem:[#allocation8 + $0x98] sm:$0xff]
    %v331 = vld [vmem:[#allocation8 + $0xa0] sm:$0xff]
    %v332 = vld [vmem:[#allocation8 + $0xa8] sm:$0xff]
    %v333 = vld [vmem:[#allocation8 + $0xb0] sm:$0xff]
    %v334 = vld [vmem:[#allocation8 + $0xb8] sm:$0xff]
    %v335 = vld [vmem:[#allocation8 + $0xc0] sm:$0xff]
    %v336 = vld [vmem:[#allocation8 + $0xc8] sm:$0xff]
    %v337 = vld [vmem:[#allocation8 + $0xd0] sm:$0xff]
    %v338 = vld [vmem:[#allocation8 + $0xd8] sm:$0xff]
    %v339 = vld [vmem:[#allocation8 + $0xe0] sm:$0xff]
    %v340 = vld [vmem:[#allocation8 + $0xe8] sm:$0xff]
    %v341 = vld [vmem:[#allocation8 + $0xf0] sm:$0xff]
    %v342 = vld [vmem:[#allocation8 + $0xf8] sm:$0xff]
    %v375 = vunpack.c.l.b16 %v311
    %v376 = vunpack.c.h.b16 %v311
    %v377 = vunpack.c.l.b16 %v312
    %v378 = vunpack.c.h.b16 %v312
    %v379 = vunpack.c.l.b16 %v313
    %v380 = vunpack.c.h.b16 %v313
    %v381 = vunpack.c.l.b16 %v314
    %v382 = vunpack.c.h.b16 %v314
    %v383 = vunpack.c.l.b16 %v315
    %v384 = vunpack.c.h.b16 %v315
    %v385 = vunpack.c.l.b16 %v316
    %v386 = vunpack.c.h.b16 %v316
    %v387 = vunpack.c.l.b16 %v317
    %v388 = vunpack.c.h.b16 %v317
    %v389 = vunpack.c.l.b16 %v318
    %v390 = vunpack.c.h.b16 %v318
    %v391 = vunpack.c.l.b16 %v319
    %v392 = vunpack.c.h.b16 %v319
    %v393 = vunpack.c.l.b16 %v320
    %v394 = vunpack.c.h.b16 %v320
    %v395 = vunpack.c.l.b16 %v321
    %v396 = vunpack.c.h.b16 %v321
    %v397 = vunpack.c.l.b16 %v322
    %v398 = vunpack.c.h.b16 %v322
    %v399 = vunpack.c.l.b16 %v323
    %v400 = vunpack.c.h.b16 %v323
    %v401 = vunpack.c.l.b16 %v324
    %v402 = vunpack.c.h.b16 %v324
    %v403 = vunpack.c.l.b16 %v325
    %v404 = vunpack.c.h.b16 %v325
    %v405 = vunpack.c.l.b16 %v326
    %v406 = vunpack.c.h.b16 %v326
    %v407 = vunpack.c.l.b16 %v327
    %v408 = vunpack.c.h.b16 %v327
    %v409 = vunpack.c.l.b16 %v328
    %v410 = vunpack.c.h.b16 %v328
    %v411 = vunpack.c.l.b16 %v329
    %v412 = vunpack.c.h.b16 %v329
    %v413 = vunpack.c.l.b16 %v330
    %v414 = vunpack.c.h.b16 %v330
    %v415 = vunpack.c.l.b16 %v331
    %v416 = vunpack.c.h.b16 %v331
    %v417 = vunpack.c.l.b16 %v332
    %v418 = vunpack.c.h.b16 %v332
    %v419 = vunpack.c.l.b16 %v333
    %v420 = vunpack.c.h.b16 %v333
    %v421 = vunpack.c.l.b16 %v334
    %v422 = vunpack.c.h.b16 %v334
    %v423 = vunpack.c.l.b16 %v335
    %v424 = vunpack.c.h.b16 %v335
    %v425 = vunpack.c.l.b16 %v336
    %v426 = vunpack.c.h.b16 %v336
    %v427 = vunpack.c.l.b16 %v337
    %v428 = vunpack.c.h.b16 %v337
    %v429 = vunpack.c.l.b16 %v338
    %v430 = vunpack.c.h.b16 %v338
    %v431 = vunpack.c.l.b16 %v339
    %v432 = vunpack.c.h.b16 %v339
    %v433 = vunpack.c.l.b16 %v340
    %v434 = vunpack.c.h.b16 %v340
    %v435 = vunpack.c.l.b16 %v341
    %v436 = vunpack.c.h.b16 %v341
    %v437 = vunpack.c.l.b16 %v342
    %v438 = vunpack.c.h.b16 %v342
    %v439 = vpack.c.b16 %v377, %v375
    %v440 = vpack.c.b16 %v378, %v376
    %v441 = vpack.c.b16 %v381, %v379
    %v442 = vpack.c.b16 %v382, %v380
    %v443 = vpack.c.b16 %v385, %v383
    %v444 = vpack.c.b16 %v386, %v384
    %v445 = vpack.c.b16 %v389, %v387
    %v446 = vpack.c.b16 %v390, %v388
    %v447 = vpack.c.b16 %v393, %v391
    %v448 = vpack.c.b16 %v394, %v392
    %v449 = vpack.c.b16 %v397, %v395
    %v450 = vpack.c.b16 %v398, %v396
    %v451 = vpack.c.b16 %v401, %v399
    %v452 = vpack.c.b16 %v402, %v400
    %v453 = vpack.c.b16 %v405, %v403
    %v454 = vpack.c.b16 %v406, %v404
    %v455 = vpack.c.b16 %v409, %v407
    %v456 = vpack.c.b16 %v410, %v408
    %v457 = vpack.c.b16 %v413, %v411
    %v458 = vpack.c.b16 %v414, %v412
    %v459 = vpack.c.b16 %v417, %v415
    %v460 = vpack.c.b16 %v418, %v416
    %v461 = vpack.c.b16 %v421, %v419
    %v462 = vpack.c.b16 %v422, %v420
    %v463 = vpack.c.b16 %v425, %v423
    %v464 = vpack.c.b16 %v426, %v424
    %v465 = vpack.c.b16 %v429, %v427
    %v466 = vpack.c.b16 %v430, %v428
    %v467 = vpack.c.b16 %v433, %v431
    %v468 = vpack.c.b16 %v434, %v432
    %v469 = vpack.c.b16 %v437, %v435
    %v470 = vpack.c.b16 %v438, %v436
    %503 = vmatprep.subr.bf16.mxu0 %v454
    %504 = vmatpush1.bf16.msra.mxu0 %v453
    %505 = vmatprep.subr.bf16.mxu0 %v452
    %506 = vmatpush1.bf16.msra.mxu0 %v451
    %507 = vmatprep.subr.bf16.mxu0 %v450
    %508 = vmatpush1.bf16.msra.mxu0 %v449
    %509 = vmatprep.subr.bf16.mxu0 %v448
    %510 = vmatpush1.bf16.msra.mxu0 %v447
    %511 = vmatprep.subr.bf16.mxu0 %v446
    %512 = vmatpush1.bf16.msra.mxu0 %v445
    %513 = vmatprep.subr.bf16.mxu0 %v444
    %514 = vmatpush1.bf16.msra.mxu0 %v443
    %515 = vmatprep.subr.bf16.mxu0 %v442
    %516 = vmatpush1.bf16.msra.mxu0 %v441
    %517 = vmatprep.subr.bf16.mxu0 %v440
    %518 = vmatpush1.bf16.msra.mxu0 %v439
    %519 = vmatprep.subr.bf16.mxu0 %v470
    %520 = vmatpush2.bf16.msra.mxu0 %v469
    %521 = vmatprep.subr.bf16.mxu0 %v468
    %522 = vmatpush2.bf16.msra.mxu0 %v467
    %523 = vmatprep.subr.bf16.mxu0 %v466
    %524 = vmatpush2.bf16.msra.mxu0 %v465
    %525 = vmatprep.subr.bf16.mxu0 %v464
    %526 = vmatpush2.bf16.msra.mxu0 %v463
    %527 = vmatprep.subr.bf16.mxu0 %v462
    %528 = vmatpush2.bf16.msra.mxu0 %v461
    %529 = vmatprep.subr.bf16.mxu0 %v460
    %530 = vmatpush2.bf16.msra.mxu0 %v459
    %531 = vmatprep.subr.bf16.mxu0 %v458
    %532 = vmatpush2.bf16.msra.mxu0 %v457
    %533 = vmatprep.subr.bf16.mxu0 %v456
    %534 = vmatpush2.bf16.msra.mxu0 %v455
    %535 = vmatprep.mubr.bf16.mxu0 %v310
    %536 = vmatmul.mubr.bf16.gmra.mxu0 %v309
    %v537 = vpop.f32.mrf.mxu0
    %v538 = vadd.f32 0.0, %v537
    %v539 = vpop.f32.mrf.mxu0
    %v540 = vadd.f32 0.0, %v539
    %v541 = vpop.f32.mrf.mxu0
    %v542 = vpop.f32.mrf.mxu0
    %543 = vdwg.mxu0
    %v544 = vmul.f32 %v538, 0.5
    %v545 = vmul.f32 %v540, 0.5
    %v546 = vtanh.pop %v544
    %v547 = vtanh.pop %v545
    %v548 = vadd.f32 %v546, 1.0
    %v549 = vadd.f32 %v547, 1.0
    %v550 = vmul.f32 %v548, 0.5
    %v551 = vmul.f32 %v549, 0.5
    %v552 = vpack.c.bf16 %v550, %v550
    %v553 = vpack.c.bf16 %v551, %v551
    %v554 = vld [vmem:[#allocation10] sm:$0xf]
    %v555 = vld [vmem:[#allocation10 + $0x4] sm:$0xf]
    %v556 = vld [vmem:[#allocation10 + $0x8] sm:$0xf]
    %v557 = vld [vmem:[#allocation10 + $0xc] sm:$0xf]
    %v558 = vld [vmem:[#allocation10 + $0x10] sm:$0xf]
    %v559 = vld [vmem:[#allocation10 + $0x14] sm:$0xf]
    %v560 = vld [vmem:[#allocation10 + $0x18] sm:$0xf]
    %v561 = vld [vmem:[#allocation10 + $0x1c] sm:$0xf]
    %v562 = vld [vmem:[#allocation10 + $0x20] sm:$0xf]
    %v563 = vld [vmem:[#allocation10 + $0x24] sm:$0xf]
    %v564 = vld [vmem:[#allocation10 + $0x28] sm:$0xf]
    %v565 = vld [vmem:[#allocation10 + $0x2c] sm:$0xf]
    %v566 = vld [vmem:[#allocation10 + $0x30] sm:$0xf]
    %v567 = vld [vmem:[#allocation10 + $0x34] sm:$0xf]
    %v568 = vld [vmem:[#allocation10 + $0x38] sm:$0xf]
    %v569 = vld [vmem:[#allocation10 + $0x3c] sm:$0xf]
    %v570 = vld [vmem:[#allocation10 + $0x40] sm:$0xf]
    %v571 = vld [vmem:[#allocation10 + $0x44] sm:$0xf]
    %v572 = vld [vmem:[#allocation10 + $0x48] sm:$0xf]
    %v573 = vld [vmem:[#allocation10 + $0x4c] sm:$0xf]
    %v574 = vld [vmem:[#allocation10 + $0x50] sm:$0xf]
    %v575 = vld [vmem:[#allocation10 + $0x54] sm:$0xf]
    %v576 = vld [vmem:[#allocation10 + $0x58] sm:$0xf]
    %v577 = vld [vmem:[#allocation10 + $0x5c] sm:$0xf]
    %v578 = vld [vmem:[#allocation10 + $0x60] sm:$0xf]
    %v579 = vld [vmem:[#allocation10 + $0x64] sm:$0xf]
    %v580 = vld [vmem:[#allocation10 + $0x68] sm:$0xf]
    %v581 = vld [vmem:[#allocation10 + $0x6c] sm:$0xf]
    %v582 = vld [vmem:[#allocation10 + $0x70] sm:$0xf]
    %v583 = vld [vmem:[#allocation10 + $0x74] sm:$0xf]
    %v584 = vld [vmem:[#allocation10 + $0x78] sm:$0xf]
    %v585 = vld [vmem:[#allocation10 + $0x7c] sm:$0xf]
    %v618 = vunpack.c.l.b16 %v554
    %v619 = vunpack.c.l.b16 %v555
    %v620 = vunpack.c.l.b16 %v556
    %v621 = vunpack.c.l.b16 %v557
    %v622 = vunpack.c.l.b16 %v558
    %v623 = vunpack.c.l.b16 %v559
    %v624 = vunpack.c.l.b16 %v560
    %v625 = vunpack.c.l.b16 %v561
    %v626 = vunpack.c.l.b16 %v562
    %v627 = vunpack.c.l.b16 %v563
    %v628 = vunpack.c.l.b16 %v564
    %v629 = vunpack.c.l.b16 %v565
    %v630 = vunpack.c.l.b16 %v566
    %v631 = vunpack.c.l.b16 %v567
    %v632 = vunpack.c.l.b16 %v568
    %v633 = vunpack.c.l.b16 %v569
    %v634 = vunpack.c.l.b16 %v570
    %v635 = vunpack.c.l.b16 %v571
    %v636 = vunpack.c.l.b16 %v572
    %v637 = vunpack.c.l.b16 %v573
    %v638 = vunpack.c.l.b16 %v574
    %v639 = vunpack.c.l.b16 %v575
    %v640 = vunpack.c.l.b16 %v576
    %v641 = vunpack.c.l.b16 %v577
    %v642 = vunpack.c.l.b16 %v578
    %v643 = vunpack.c.l.b16 %v579
    %v644 = vunpack.c.l.b16 %v580
    %v645 = vunpack.c.l.b16 %v581
    %v646 = vunpack.c.l.b16 %v582
    %v647 = vunpack.c.l.b16 %v583
    %v648 = vunpack.c.l.b16 %v584
    %v649 = vunpack.c.l.b16 %v585
    %v650 = vpack.c.b16 %v619, %v618
    %v651 = vpack.c.b16 %v621, %v620
    %v652 = vpack.c.b16 %v623, %v622
    %v653 = vpack.c.b16 %v625, %v624
    %v654 = vpack.c.b16 %v627, %v626
    %v655 = vpack.c.b16 %v629, %v628
    %v656 = vpack.c.b16 %v631, %v630
    %v657 = vpack.c.b16 %v633, %v632
    %v658 = vpack.c.b16 %v635, %v634
    %v659 = vpack.c.b16 %v637, %v636
    %v660 = vpack.c.b16 %v639, %v638
    %v661 = vpack.c.b16 %v641, %v640
    %v662 = vpack.c.b16 %v643, %v642
    %v663 = vpack.c.b16 %v645, %v644
    %v664 = vpack.c.b16 %v647, %v646
    %v665 = vpack.c.b16 %v649, %v648
    %682 = vmatprep.subr.bf16.mxu0 0
    %683 = vmatpush1.bf16.msra.mxu0 %v657
    %684 = vmatprep.subr.bf16.mxu0 0
    %685 = vmatpush1.bf16.msra.mxu0 %v656
    %686 = vmatprep.subr.bf16.mxu0 0
    %687 = vmatpush1.bf16.msra.mxu0 %v655
    %688 = vmatprep.subr.bf16.mxu0 0
    %689 = vmatpush1.bf16.msra.mxu0 %v654
    %690 = vmatprep.subr.bf16.mxu0 0
    %691 = vmatpush1.bf16.msra.mxu0 %v653
    %692 = vmatprep.subr.bf16.mxu0 0
    %693 = vmatpush1.bf16.msra.mxu0 %v652
    %694 = vmatprep.subr.bf16.mxu0 0
    %695 = vmatpush1.bf16.msra.mxu0 %v651
    %696 = vmatprep.subr.bf16.mxu0 0
    %697 = vmatpush1.bf16.msra.mxu0 %v650
    %698 = vmatprep.subr.bf16.mxu0 0
    %699 = vmatpush2.bf16.msra.mxu0 %v665
    %700 = vmatprep.subr.bf16.mxu0 0
    %701 = vmatpush2.bf16.msra.mxu0 %v664
    %702 = vmatprep.subr.bf16.mxu0 0
    %703 = vmatpush2.bf16.msra.mxu0 %v663
    %704 = vmatprep.subr.bf16.mxu0 0
    %705 = vmatpush2.bf16.msra.mxu0 %v662
    %706 = vmatprep.subr.bf16.mxu0 0
    %707 = vmatpush2.bf16.msra.mxu0 %v661
    %708 = vmatprep.subr.bf16.mxu0 0
    %709 = vmatpush2.bf16.msra.mxu0 %v660
    %710 = vmatprep.subr.bf16.mxu0 0
    %711 = vmatpush2.bf16.msra.mxu0 %v659
    %712 = vmatprep.subr.bf16.mxu0 0
    %713 = vmatpush2.bf16.msra.mxu0 %v658
    %714 = vmatprep.mubr.bf16.mxu0 %v553
    %715 = vmatmul.mubr.bf16.gmra.mxu0 %v552
    %v716 = vpop.f32.mrf.mxu0
    %v717 = vadd.f32 0.0, %v716
    %v718 = vpop.f32.mrf.mxu0
    %v719 = vpop.f32.mrf.mxu0
    %v720 = vpop.f32.mrf.mxu0
    %721 = vdwg.mxu0
    %v722 = vmul.f32 %v717, 0.5
    %v723 = vtanh.pop %v722
    %v724 = vadd.f32 %v723, 1.0
    %v725 = vmul.f32 %v724, 0.5
    %v726 = vpack.c.bf16 %v725, %v725
    %v727 = vld [vmem:[#allocation11] sm:$0xf]
    %v728 = vld [vmem:[#allocation11 + $0x4] sm:$0xf]
    %v729 = vld [vmem:[#allocation11 + $0x8] sm:$0xf]
    %v730 = vld [vmem:[#allocation11 + $0xc] sm:$0xf]
    %v731 = vld [vmem:[#allocation11 + $0x10] sm:$0xf]
    %v732 = vld [vmem:[#allocation11 + $0x14] sm:$0xf]
    %v733 = vld [vmem:[#allocation11 + $0x18] sm:$0xf]
    %v734 = vld [vmem:[#allocation11 + $0x1c] sm:$0xf]
    %v735 = vld [vmem:[#allocation11 + $0x20] sm:$0xf]
    %v736 = vld [vmem:[#allocation11 + $0x24] sm:$0xf]
    %v737 = vld [vmem:[#allocation11 + $0x28] sm:$0xf]
    %v738 = vld [vmem:[#allocation11 + $0x2c] sm:$0xf]
    %v739 = vld [vmem:[#allocation11 + $0x30] sm:$0xf]
    %v740 = vld [vmem:[#allocation11 + $0x34] sm:$0xf]
    %v741 = vld [vmem:[#allocation11 + $0x38] sm:$0xf]
    %v742 = vld [vmem:[#allocation11 + $0x3c] sm:$0xf]
    %v743 = vld [vmem:[%s6] sm:$0x1]
    %v745 = vlaneseq
    %v746 = vshrl.u32 %v745, 7
    %v747 = vsub.s32 0, %v746
    %v748 = vrot.slane %v743, %v747
    %v766 = vunpack.c.l.b16 %v727
    %v767 = vunpack.c.l.b16 %v728
    %v768 = vunpack.c.l.b16 %v729
    %v769 = vunpack.c.l.b16 %v730
    %v770 = vunpack.c.l.b16 %v731
    %v771 = vunpack.c.l.b16 %v732
    %v772 = vunpack.c.l.b16 %v733
    %v773 = vunpack.c.l.b16 %v734
    %v774 = vunpack.c.l.b16 %v735
    %v775 = vunpack.c.l.b16 %v736
    %v776 = vunpack.c.l.b16 %v737
    %v777 = vunpack.c.l.b16 %v738
    %v778 = vunpack.c.l.b16 %v739
    %v779 = vunpack.c.l.b16 %v740
    %v780 = vunpack.c.l.b16 %v741
    %v781 = vunpack.c.l.b16 %v742
    %v782 = vpack.c.b16 %v767, %v766
    %v783 = vpack.c.b16 %v769, %v768
    %v784 = vpack.c.b16 %v771, %v770
    %v785 = vpack.c.b16 %v773, %v772
    %v786 = vpack.c.b16 %v775, %v774
    %v787 = vpack.c.b16 %v777, %v776
    %v788 = vpack.c.b16 %v779, %v778
    %v789 = vpack.c.b16 %v781, %v780
    %798 = vmatprep.subr.bf16.mxu0 0
    %799 = vmatpush1.bf16.msra.mxu0 %v789
    %800 = vmatprep.subr.bf16.mxu0 0
    %801 = vmatpush1.bf16.msra.mxu0 %v788
    %802 = vmatprep.subr.bf16.mxu0 0
    %803 = vmatpush1.bf16.msra.mxu0 %v787
    %804 = vmatprep.subr.bf16.mxu0 0
    %805 = vmatpush1.bf16.msra.mxu0 %v786
    %806 = vmatprep.subr.bf16.mxu0 0
    %807 = vmatpush1.bf16.msra.mxu0 %v785
    %808 = vmatprep.subr.bf16.mxu0 0
    %809 = vmatpush1.bf16.msra.mxu0 %v784
    %810 = vmatprep.subr.bf16.mxu0 0
    %811 = vmatpush1.bf16.msra.mxu0 %v783
    %812 = vmatprep.subr.bf16.mxu0 0
    %813 = vmatpush1.bf16.msra.mxu0 %v782
    %814 = vmatprep.subr.bf16.mxu0 0
    %815 = vmatpush2.bf16.msra.mxu0 0
    %816 = vmatprep.subr.bf16.mxu0 0
    %817 = vmatpush2.bf16.msra.mxu0 0
    %818 = vmatprep.subr.bf16.mxu0 0
    %819 = vmatpush2.bf16.msra.mxu0 0
    %820 = vmatprep.subr.bf16.mxu0 0
    %821 = vmatpush2.bf16.msra.mxu0 0
    %822 = vmatprep.subr.bf16.mxu0 0
    %823 = vmatpush2.bf16.msra.mxu0 0
    %824 = vmatprep.subr.bf16.mxu0 0
    %825 = vmatpush2.bf16.msra.mxu0 0
    %826 = vmatprep.subr.bf16.mxu0 0
    %827 = vmatpush2.bf16.msra.mxu0 0
    %828 = vmatprep.subr.bf16.mxu0 0
    %829 = vmatpush2.bf16.msra.mxu0 0
    %830 = vmatprep.mubr.bf16.mxu0 0
    %831 = vmatmul.mubr.bf16.gmra.mxu0 %v726
    %v832 = vpop.f32.mrf.mxu0
    %v833 = vadd.f32 %v748, %v832
    %v834 = vpop.f32.mrf.mxu0
    %v835 = vpop.f32.mrf.mxu0
    %v836 = vpop.f32.mrf.mxu0
    %837 = vdwg.mxu0
    %838 = vmax.xlane.f32.xlu0 %v833
    %v839 = vpop.xlane.xlu0 %838
    %v840 = vsub.f32 %v833, %v839
    %v841 = vmul.f32 %v840, 1.442695
    %v842 = vpow.pop %v841
    %843 = vadd.xlane.f32.xlu0 %v842
    %v844 = vpop.xlane.xlu0 %843
    %v845 = vrcp.pop %v844
    %v846 = vmul.f32 %v842, %v845
    %847 = vst [vmem:[#allocation13] sm:$0xff] %v846
    // Predicated region
    $region54: #{_forward_discrete.1} parent=1 // pred_check
      _
    $region55: #{_forward_discrete.1} parent=1 // pred_check_branch
      %849 = sbr.rel (0) target = $region57
    $region56: #{_forward_discrete.1} parent=1 // pred_region
      %s851 = ssub.s32 128, 32
      %852 = vsyncadd [#allocation4], %s851
      %s853 = sshll.u32 [#allocation13], 4
      %s854 = int_to_ptr.vmem [resolvable:$true] %s853
      %859 = dma.vmem_to_hbm [thread:$0]  %s854, 32, %s7, [#allocation4], 32, 32, 2
    $region57: #{_forward_discrete.1} parent=1 // pred_fallthru
      _
    // Predicated region
    $region58: #{_forward_discrete.1} parent=1 // pred_check
      _
    $region59: #{_forward_discrete.1} parent=1 // pred_check_branch
      %861 = sbr.rel (0) target = $region61
    $region60: #{_forward_discrete.1} parent=1 // pred_region
      %862 = dma.done [#allocation4], 128
    $region61: #{_forward_discrete.1} parent=1 // pred_fallthru
      _
    %863 = vsyncpa [#allocation3], 1
    %864 = vsyncpa [#allocation6], 1
    %865 = vsyncpa [#allocation9], 1
    %866 = vsyncpa [#allocation12], 1
    %867 = vsyncpa [#allocation4], 1

</llo_original>
